<compile_context>
chip_gen: v7x
topology: tpu7x:2x2x1
jax: 0.10.0
libtpu: 0.0.40
codegen_flags: <defaults>
</compile_context>

<pallas_src>
import functools

import jax
import jax.numpy as jnp
from jax.experimental import pallas as pl
from jax.experimental.pallas import tpu as pltpu


def _actor_critic_kernel(action_dim, action_scale,
                         x_ref, w1_ref, w2_ref, bias_ref, out_ref):
    x = x_ref[...]
    two_h = w1_ref.shape[1]

    bias = bias_ref[...]                 # (1, 2H + 2A + 1), one vreg row
    b1 = bias[:, :two_h]
    b2 = bias[:, two_h:]

    # Layer 1: pi and v hidden layers fused along output columns -> (TB, 2H).
    h = jnp.dot(x, w1_ref[...], preferred_element_type=jnp.float32) + b1
    h = jnp.maximum(h, 0.0)

    # Layer 2: block-diagonal W2 computes [h_pi @ pi_w2 | h_v @ v_w2] in one dot.
    raw = jnp.dot(h, w2_ref[...], preferred_element_type=jnp.float32) + b2

    # Per-column head activation (all within one vreg, lane select is cheap):
    #   cols [0, A)      -> action_scale * tanh   (mu)
    #   cols [A, 2A)     -> softplus + 1e-3       (sigma)
    #   col  [2A, 2A+1)  -> identity              (value)
    col = jax.lax.broadcasted_iota(jnp.int32, raw.shape, dimension=1)
    mu = action_scale * jnp.tanh(raw)
    sigma = jnp.logaddexp(raw, 0.0) + 0.001      # softplus(x) + 0.001
    out_ref[...] = jnp.where(col < action_dim, mu,
                             jnp.where(col < 2 * action_dim, sigma, raw))


def pack_params(params, action_dim):
    """One-time packing of the per-layer weights into fused slabs.

    Do this OUTSIDE the hot path (at init / after each optimizer step), so the
    per-call forward launches the kernel with zero extra XLA glue.
    """
    hidden = params["pi_w1"].shape[1]
    two_a = 2 * action_dim

    # (S, 2H): [pi_w1 | v_w1]
    w1 = jnp.concatenate([params["pi_w1"], params["v_w1"]], axis=1)

    # (2H, 2A+1) block-diagonal: [h_pi | h_v] @ w2 = [h_pi @ pi_w2 | h_v @ v_w2]
    w2 = jnp.zeros((2 * hidden, two_a + 1), jnp.float32)
    w2 = w2.at[:hidden, :two_a].set(params["pi_w2"])
    w2 = w2.at[hidden:, two_a:].set(params["v_w2"])

    # (1, 2H + 2A + 1): [pi_b1 | v_b1 | pi_b2 | v_b2]
    bias = jnp.concatenate(
        [params["pi_b1"], params["v_b1"], params["pi_b2"], params["v_b2"]],
        axis=1)

    return {"w1": w1, "w2": w2, "bias": bias}


@functools.partial(jax.jit, static_argnames=("action_dim", "action_scale"))
def actor_critic_forward(x, packed, action_dim, action_scale=1.0):
    """x: (B, state_dim) f32.  Returns (mu (B, A), sigma (B, A), values (B, 1))."""
    B, S = x.shape
    w1, w2, bias = packed["w1"], packed["w2"], packed["bias"]
    two_h = w1.shape[1]
    n_out = 2 * action_dim + 1

    # Batch tiling: single block for small B; otherwise 128-row tiles sharded
    # across TensorCores ("parallel" grid axis). Weights stay resident.
    if B <= 128:
        tb = B
    else:
        tb = 128
        if B % tb != 0:
            raise ValueError(f"batch {B} must be a multiple of {tb}")
    grid = (B // tb,)

    kernel = functools.partial(_actor_critic_kernel, action_dim, action_scale)

    flops = 2 * B * S * two_h + 2 * B * two_h * n_out
    bytes_accessed = 4 * (x.size + w1.size + w2.size + bias.size + B * n_out)
    cost = pl.CostEstimate(flops=int(flops),
                           transcendentals=int(2 * B * n_out),
                           bytes_accessed=int(bytes_accessed))

    out = pl.pallas_call(
        kernel,
        out_shape=jax.ShapeDtypeStruct((B, n_out), jnp.float32),
        grid=grid,
        in_specs=[
            pl.BlockSpec((tb, S), lambda i: (i, 0)),          # x tile
            pl.BlockSpec(w1.shape, lambda i: (0, 0)),         # resident weights
            pl.BlockSpec(w2.shape, lambda i: (0, 0)),
            pl.BlockSpec(bias.shape, lambda i: (0, 0)),
        ],
        out_specs=pl.BlockSpec((tb, n_out), lambda i: (i, 0)),
        compiler_params=pltpu.CompilerParams(
            dimension_semantics=("parallel",)),
        cost_estimate=cost,
    )(x, w1, w2, bias)

    mu = out[:, :action_dim]
    sigma = out[:, action_dim:2 * action_dim]
    values = out[:, 2 * action_dim:]
    return mu, sigma, values


def init_params(key, state_dim, action_dim, hidden):
    """Matches ActorCritic.init_weights: weights ~ N(0, 0.1), biases = 0."""
    ks = jax.random.split(key, 4)
    std = 0.1
    return {
        "pi_w1": std * jax.random.normal(ks[0], (state_dim, hidden), jnp.float32),
        "pi_b1": jnp.zeros((1, hidden), jnp.float32),
        "pi_w2": std * jax.random.normal(ks[1], (hidden, 2 * action_dim), jnp.float32),
        "pi_b2": jnp.zeros((1, 2 * action_dim), jnp.float32),
        "v_w1": std * jax.random.normal(ks[2], (state_dim, hidden), jnp.float32),
        "v_b1": jnp.zeros((1, hidden), jnp.float32),
        "v_w2": std * jax.random.normal(ks[3], (hidden, 1), jnp.float32),
        "v_b2": jnp.zeros((1, 1), jnp.float32),
    }


def _reference_forward(x, params, action_dim, action_scale=1.0):
    """Pure-JAX reference mirroring the PyTorch forward."""
    h = jnp.maximum(x @ params["pi_w1"] + params["pi_b1"], 0.0)
    pi = h @ params["pi_w2"] + params["pi_b2"]
    mu, sg = pi[:, :action_dim], pi[:, action_dim:]
    mu = action_scale * jnp.tanh(mu)
    sigma = jax.nn.softplus(sg) + 0.001
    hv = jnp.maximum(x @ params["v_w1"] + params["v_b1"], 0.0)
    values = hv @ params["v_w2"] + params["v_b2"]
    return mu, sigma, values


def _check(x, params, packed, action_dim, action_scale):
    mu, sigma, values = actor_critic_forward(x, packed, action_dim, action_scale)
    jax.block_until_ready((mu, sigma, values))
    mu_r, sigma_r, values_r = _reference_forward(x, params, action_dim, action_scale)
    B = x.shape[0]
    assert mu.shape == (B, action_dim)
    assert sigma.shape == (B, action_dim)
    assert values.shape == (B, 1)
    assert jnp.allclose(mu, mu_r, atol=1e-4)
    assert jnp.allclose(sigma, sigma_r, atol=1e-4)
    assert jnp.allclose(values, values_r, atol=1e-4)


if __name__ == "__main__":
    state_dim, action_dim, hidden = 16, 4, 32
    action_scale = 1.0

    key = jax.random.PRNGKey(0)
    k_x1, k_x2, k_p = jax.random.split(key, 3)
    params = init_params(k_p, state_dim, action_dim, hidden)
    packed = pack_params(params, action_dim)   # one-time packing, off hot path

    # Small batch (single-block grid).
    x_small = jax.random.normal(k_x1, (8, state_dim), jnp.float32)
    _check(x_small, params, packed, action_dim, action_scale)

    # Larger batch exercising the batch-tiled, megacore-parallel path.
    x_big = jax.random.normal(k_x2, (512, state_dim), jnp.float32)
    _check(x_big, params, packed, action_dim, action_scale)

    print("KERNEL_OK")
</pallas_src>

<mosaic_0001>
module attributes {stable_mosaic.version = 11 : i64} {
  func.func @_actor_critic_kernel(%arg0: i32, %arg1: memref<8x16xf32, #tpu.memory_space<vmem>>, %arg2: memref<16x64xf32, #tpu.memory_space<vmem>>, %arg3: memref<64x9xf32, #tpu.memory_space<vmem>>, %arg4: memref<1x73xf32, #tpu.memory_space<vmem>>, %arg5: memref<8x9xf32, #tpu.memory_space<vmem>>) attributes {dimension_semantics = [#tpu.dimension_semantics<parallel>], iteration_bounds = array<i64: 1>, scalar_prefetch = 0 : i64, scratch_operands = 0 : i64, tpu.core_type = #tpu.core_type<tc>, window_params = [{transform_indices = @transform_0, window_bounds = array<i64: 8, 16>}, {pipeline_mode = #tpu.pipeline_mode<synchronous>, transform_indices = @transform_1, window_bounds = array<i64: 16, 64>}, {pipeline_mode = #tpu.pipeline_mode<synchronous>, transform_indices = @transform_2, window_bounds = array<i64: 64, 9>}, {pipeline_mode = #tpu.pipeline_mode<synchronous>, transform_indices = @transform_3, window_bounds = array<i64: 1, 73>}, {transform_indices = @transform_4, window_bounds = array<i64: 8, 9>}]} {
    %c0 = arith.constant 0 : index
    %c0_0 = arith.constant 0 : index
    %0 = vector.load %arg1[%c0, %c0_0] : memref<8x16xf32, #tpu.memory_space<vmem>>, vector<8x16xf32>
    %c0_1 = arith.constant 0 : index
    %c0_2 = arith.constant 0 : index
    %1 = vector.load %arg4[%c0_1, %c0_2] : memref<1x73xf32, #tpu.memory_space<vmem>>, vector<1x73xf32>
    %2 = vector.extract_strided_slice %1 {offsets = [0, 0], sizes = [1, 64], strides = [1, 1]} : vector<1x73xf32> to vector<1x64xf32>
    %3 = vector.extract_strided_slice %1 {offsets = [0, 64], sizes = [1, 9], strides = [1, 1]} : vector<1x73xf32> to vector<1x9xf32>
    %c0_3 = arith.constant 0 : index
    %c0_4 = arith.constant 0 : index
    %4 = vector.load %arg2[%c0_3, %c0_4] : memref<16x64xf32, #tpu.memory_space<vmem>>, vector<16x64xf32>
    %cst = arith.constant dense<0.000000e+00> : vector<8x64xf32>
    %5 = tpu.matmul %0, %4, %cst {dimension_numbers = #tpu.dot_dimension_numbers<[1], [0], [0], [1], [0, 0, 1, 1], [], []>} : vector<8x16xf32>, vector<16x64xf32>, vector<8x64xf32> -> vector<8x64xf32>
    %6 = vector.broadcast %2 : vector<1x64xf32> to vector<8x64xf32>
    %7 = arith.addf %5, %6 : vector<8x64xf32>
    %cst_5 = arith.constant 0.000000e+00 : f32
    %8 = vector.broadcast %cst_5 : f32 to vector<8x64xf32>
    %9 = arith.maximumf %7, %8 : vector<8x64xf32>
    %c0_6 = arith.constant 0 : index
    %c0_7 = arith.constant 0 : index
    %10 = vector.load %arg3[%c0_6, %c0_7] : memref<64x9xf32, #tpu.memory_space<vmem>>, vector<64x9xf32>
    %cst_8 = arith.constant dense<0.000000e+00> : vector<8x9xf32>
    %11 = tpu.matmul %9, %10, %cst_8 {dimension_numbers = #tpu.dot_dimension_numbers<[1], [0], [0], [1], [0, 0, 1, 1], [], []>} : vector<8x64xf32>, vector<64x9xf32>, vector<8x9xf32> -> vector<8x9xf32>
    %12 = vector.broadcast %3 : vector<1x9xf32> to vector<8x9xf32>
    %13 = arith.addf %11, %12 : vector<8x9xf32>
    %14 = tpu.iota {dimensions = array<i32: 1>} : vector<8x9xi32>
    %15 = math.tanh %13 : vector<8x9xf32>
    %cst_9 = arith.constant 1.000000e+00 : f32
    %16 = vector.broadcast %cst_9 : f32 to vector<8x9xf32>
    %17 = arith.mulf %16, %15 : vector<8x9xf32>
    %cst_10 = arith.constant 0.000000e+00 : f32
    %18 = vector.broadcast %cst_10 : f32 to vector<8x9xf32>
    %19 = arith.maximumf %13, %18 : vector<8x9xf32>
    %20 = vector.broadcast %cst_10 : f32 to vector<8x9xf32>
    %21 = arith.subf %13, %20 : vector<8x9xf32>
    %22 = arith.cmpf one, %21, %21 : vector<8x9xf32>
    %23 = vector.broadcast %cst_10 : f32 to vector<8x9xf32>
    %24 = arith.addf %13, %23 : vector<8x9xf32>
    %25 = math.absf %21 : vector<8x9xf32>
    %cst_11 = arith.constant 0.000000e+00 : f32
    %26 = vector.broadcast %cst_11 : f32 to vector<8x9xf32>
    %27 = arith.subf %26, %25 : vector<8x9xf32>
    %28 = math.exp %27 : vector<8x9xf32>
    %29 = math.log1p %28 : vector<8x9xf32>
    %30 = arith.addf %19, %29 : vector<8x9xf32>
    %31 = arith.select %22, %24, %30 : vector<8x9xi1>, vector<8x9xf32>
    %cst_12 = arith.constant 1.000000e-03 : f32
    %32 = vector.broadcast %cst_12 : f32 to vector<8x9xf32>
    %33 = arith.addf %31, %32 : vector<8x9xf32>
    %c4_i32 = arith.constant 4 : i32
    %34 = vector.broadcast %c4_i32 : i32 to vector<8x9xi32>
    %35 = arith.cmpi slt, %14, %34 : vector<8x9xi32>
    %c8_i32 = arith.constant 8 : i32
    %36 = vector.broadcast %c8_i32 : i32 to vector<8x9xi32>
    %37 = arith.cmpi slt, %14, %36 : vector<8x9xi32>
    %38 = arith.select %37, %33, %13 : vector<8x9xi1>, vector<8x9xf32>
    %39 = arith.select %35, %17, %38 : vector<8x9xi1>, vector<8x9xf32>
    %c0_13 = arith.constant 0 : index
    %c0_14 = arith.constant 0 : index
    %40 = vector.load %arg5[%c0_13, %c0_14] : memref<8x9xf32, #tpu.memory_space<vmem>>, vector<8x9xf32>
    tpu.vector_store %arg5[%c0_13, %c0_14], %39 {strides = array<i32>} : memref<8x9xf32, #tpu.memory_space<vmem>>, vector<8x9xf32>,
    return
  }
  func.func @transform_0(%arg0: i32) -> (i32, i32) {
    %c0_i32 = arith.constant 0 : i32
    %c0_i32_0 = arith.constant 0 : i32
    return %arg0, %c0_i32 : i32, i32
  }
  func.func @transform_1(%arg0: i32) -> (i32, i32) {
    %c0_i32 = arith.constant 0 : i32
    %c0_i32_0 = arith.constant 0 : i32
    %c0_i32_1 = arith.constant 0 : i32
    return %c0_i32, %c0_i32_0 : i32, i32
  }
  func.func @transform_2(%arg0: i32) -> (i32, i32) {
    %c0_i32 = arith.constant 0 : i32
    %c0_i32_0 = arith.constant 0 : i32
    %c0_i32_1 = arith.constant 0 : i32
    return %c0_i32, %c0_i32_0 : i32, i32
  }
  func.func @transform_3(%arg0: i32) -> (i32, i32) {
    %c0_i32 = arith.constant 0 : i32
    %c0_i32_0 = arith.constant 0 : i32
    %c0_i32_1 = arith.constant 0 : i32
    return %c0_i32, %c0_i32_0 : i32, i32
  }
  func.func @transform_4(%arg0: i32) -> (i32, i32) {
    %c0_i32 = arith.constant 0 : i32
    %c0_i32_0 = arith.constant 0 : i32
    return %arg0, %c0_i32 : i32, i32
  }
}

</mosaic_0001>

<llo_original>
// kernel: actor_critic_forward.1
$region0: #{actor_critic_forward.1}
  #allocation0 [shape = 'u32[]', space=smem, size = 0x4, offset = 0x4, fixed_abs, tag = 'smem constant byte address 0x4 - core index']
  #allocation1 [shape = 'u32[144,128]{1,0:T(1,128)}', space=vmem, size = 0x12000, scoped, tag = 'internal scratch']
  %s0 = inlined_call_operand.vmem [shape: f32[8,16], index: 0, kind: input, shape index: {}]
  %s1 = inlined_call_operand.vmem [shape: f32[16,64], index: 1, kind: input, shape index: {}]
  %s2 = inlined_call_operand.vmem [shape: f32[64,9], index: 2, kind: input, shape index: {}]
  %s3 = inlined_call_operand.vmem [shape: f32[1,73], index: 3, kind: input, shape index: {}]
  %s4 = inlined_call_operand.vmem [shape: f32[8,9], index: 4, kind: output, shape index: {}]
  %s5 = sld [smem:[#allocation0]]
  $region26: #{actor_critic_forward.1} parent=0
    _
  %s7 = ssub.s32 1, %s5
  %s8 = scalar_select 0, %s7, %s5
  // Predicated region
  $region2: #{actor_critic_forward.1} parent=0 // pred_check
    _
  $region3: #{actor_critic_forward.1} parent=0 // pred_check_branch
    %10 = sbr.rel (0) target = $region5
  $region4: #{actor_critic_forward.1} parent=0 // pred_region
    _
  $region5: #{actor_critic_forward.1} parent=0 // pred_fallthru
    _
  // Predicated region
  $region6: #{actor_critic_forward.1} parent=0 // pred_check
    _
  $region7: #{actor_critic_forward.1} parent=0 // pred_check_branch
    %12 = sbr.rel (0) target = $region9
  $region8: #{actor_critic_forward.1} parent=0 // pred_region
    _
  $region9: #{actor_critic_forward.1} parent=0 // pred_fallthru
    _
  // Predicated region
  $region10: #{actor_critic_forward.1} parent=0 // pred_check
    _
  $region11: #{actor_critic_forward.1} parent=0 // pred_check_branch
    %14 = sbr.rel (0) target = $region13
  $region12: #{actor_critic_forward.1} parent=0 // pred_region
    _
  $region13: #{actor_critic_forward.1} parent=0 // pred_fallthru
    _
  // Predicated region
  $region14: #{actor_critic_forward.1} parent=0 // pred_check
    _
  $region15: #{actor_critic_forward.1} parent=0 // pred_check_branch
    %16 = sbr.rel (0) target = $region17
  $region16: #{actor_critic_forward.1} parent=0 // pred_region
    _
  $region17: #{actor_critic_forward.1} parent=0 // pred_fallthru
    _
  %v17 = vld [vmem:[%s0] sm:$0xff]
  %v18 = vld [vmem:[%s3] sm:$0x1]
  %v19 = vld [vmem:[%s1] sm:$0xff]
  %v20 = vld [vmem:[%s1 + $0x8] sm:$0xff]
  %v22 = vlaneseq
  %v23 = vshrl.u32 %v22, 7
  %v24 = vsub.s32 0, %v23
  %v25 = vrot.slane %v18, %v24
  %vm27 = vcmask 130048
  %v29 = vsel %vm27, %v17, 0
  %31 = vmatprep.subr.mxu0 0.0
  %32 = vmatpush1.msra.mxu0 %v19
  %33 = vmatprep.subr.mxu0 0.0
  %34 = vmatpush1.msra.mxu0 %v20
  %35 = vmatprep.subr.mxu0 0.0
  %36 = vmatpush1.msra.mxu0 0.0
  %37 = vmatprep.subr.mxu0 0.0
  %38 = vmatpush1.msra.mxu0 0.0
  %39 = vmatprep.subr.mxu0 0.0
  %40 = vmatpush1.msra.mxu0 0.0
  %41 = vmatprep.subr.mxu0 0.0
  %42 = vmatpush1.msra.mxu0 0.0
  %43 = vmatprep.subr.mxu0 0.0
  %44 = vmatpush1.msra.mxu0 0.0
  %45 = vmatprep.subr.mxu0 0.0
  %46 = vmatpush1.msra.mxu0 0.0
  %47 = vmatprep.subr.mxu0 0.0
  %48 = vmatpush1.msra.mxu0 0.0
  %49 = vmatprep.subr.mxu0 0.0
  %50 = vmatpush1.msra.mxu0 0.0
  %51 = vmatprep.subr.mxu0 0.0
  %52 = vmatpush1.msra.mxu0 0.0
  %53 = vmatprep.subr.mxu0 0.0
  %54 = vmatpush1.msra.mxu0 0.0
  %55 = vmatprep.subr.mxu0 0.0
  %56 = vmatpush1.msra.mxu0 0.0
  %57 = vmatprep.subr.mxu0 0.0
  %58 = vmatpush1.msra.mxu0 0.0
  %59 = vmatprep.subr.mxu0 0.0
  %60 = vmatpush1.msra.mxu0 0.0
  %61 = vmatprep.subr.mxu0 0.0
  %62 = vmatpush1.msra.mxu0 0.0
  %63 = vmatprep.subr.mxu0 0.0
  %64 = vmatpush1.msra.mxu0 0.0
  %65 = vmatprep.subr.mxu0 0.0
  %66 = vmatpush1.msra.mxu0 0.0
  %67 = vmatprep.subr.mxu0 0.0
  %68 = vmatpush1.msra.mxu0 0.0
  %69 = vmatprep.subr.mxu0 0.0
  %70 = vmatpush1.msra.mxu0 0.0
  %71 = vmatprep.subr.mxu0 0.0
  %72 = vmatpush1.msra.mxu0 0.0
  %73 = vmatprep.subr.mxu0 0.0
  %74 = vmatpush1.msra.mxu0 0.0
  %75 = vmatprep.subr.mxu0 0.0
  %76 = vmatpush1.msra.mxu0 0.0
  %77 = vmatprep.subr.mxu0 0.0
  %78 = vmatpush1.msra.mxu0 0.0
  %79 = vmatprep.subr.mxu0 0.0
  %80 = vmatpush1.msra.mxu0 0.0
  %81 = vmatprep.subr.mxu0 0.0
  %82 = vmatpush1.msra.mxu0 0.0
  %83 = vmatprep.subr.mxu0 0.0
  %84 = vmatpush1.msra.mxu0 0.0
  %85 = vmatprep.subr.mxu0 0.0
  %86 = vmatpush1.msra.mxu0 0.0
  %87 = vmatprep.subr.mxu0 0.0
  %88 = vmatpush1.msra.mxu0 0.0
  %89 = vmatprep.subr.mxu0 0.0
  %90 = vmatpush1.msra.mxu0 0.0
  %91 = vmatprep.subr.mxu0 0.0
  %92 = vmatpush1.msra.mxu0 0.0
  %93 = vmatprep.subr.mxu0 0.0
  %94 = vmatpush1.msra.mxu0 0.0
  %95 = vmatprep.mubr.f32.mxu0 0.0
  %96 = vmatmul.mubr.f32.gmra.mrb[0].mxu0 %v29
  %v97 = vpop.f32.mrb[0].mxu0
  %v98 = vadd.f32 %v25, %v97
  %v99 = vpop.f32.mrb[0].mxu0
  %100 = vdwg.mxu0
  %v101 = vmax.f32 %v98, 0.0
  %v102 = vld [vmem:[%s2] sm:$0xff]
  %v103 = vld [vmem:[%s2 + $0x8] sm:$0xff]
  %v104 = vld [vmem:[%s2 + $0x10] sm:$0xff]
  %v105 = vld [vmem:[%s2 + $0x18] sm:$0xff]
  %v106 = vld [vmem:[%s2 + $0x20] sm:$0xff]
  %v107 = vld [vmem:[%s2 + $0x28] sm:$0xff]
  %v108 = vld [vmem:[%s2 + $0x30] sm:$0xff]
  %v109 = vld [vmem:[%s2 + $0x38] sm:$0xff]
  %110 = vrot.lane.b32.xlu0 %v25, 64
  %v111 = vpop.permute.xlu0 %110
  %vm113 = vcmask 523264
  %v115 = vsel %vm113, %v101, 0
  %117 = vmatprep.subr.mxu0 0.0
  %118 = vmatpush1.msra.mxu0 %v102
  %119 = vmatprep.subr.mxu0 0.0
  %120 = vmatpush1.msra.mxu0 %v103
  %121 = vmatprep.subr.mxu0 0.0
  %122 = vmatpush1.msra.mxu0 %v104
  %123 = vmatprep.subr.mxu0 0.0
  %124 = vmatpush1.msra.mxu0 %v105
  %125 = vmatprep.subr.mxu0 0.0
  %126 = vmatpush1.msra.mxu0 %v106
  %127 = vmatprep.subr.mxu0 0.0
  %128 = vmatpush1.msra.mxu0 %v107
  %129 = vmatprep.subr.mxu0 0.0
  %130 = vmatpush1.msra.mxu0 %v108
  %131 = vmatprep.subr.mxu0 0.0
  %132 = vmatpush1.msra.mxu0 %v109
  %133 = vmatprep.subr.mxu0 0.0
  %134 = vmatpush1.msra.mxu0 0.0
  %135 = vmatprep.subr.mxu0 0.0
  %136 = vmatpush1.msra.mxu0 0.0
  %137 = vmatprep.subr.mxu0 0.0
  %138 = vmatpush1.msra.mxu0 0.0
  %139 = vmatprep.subr.mxu0 0.0
  %140 = vmatpush1.msra.mxu0 0.0
  %141 = vmatprep.subr.mxu0 0.0
  %142 = vmatpush1.msra.mxu0 0.0
  %143 = vmatprep.subr.mxu0 0.0
  %144 = vmatpush1.msra.mxu0 0.0
  %145 = vmatprep.subr.mxu0 0.0
  %146 = vmatpush1.msra.mxu0 0.0
  %147 = vmatprep.subr.mxu0 0.0
  %148 = vmatpush1.msra.mxu0 0.0
  %149 = vmatprep.subr.mxu0 0.0
  %150 = vmatpush1.msra.mxu0 0.0
  %151 = vmatprep.subr.mxu0 0.0
  %152 = vmatpush1.msra.mxu0 0.0
  %153 = vmatprep.subr.mxu0 0.0
  %154 = vmatpush1.msra.mxu0 0.0
  %155 = vmatprep.subr.mxu0 0.0
  %156 = vmatpush1.msra.mxu0 0.0
  %157 = vmatprep.subr.mxu0 0.0
  %158 = vmatpush1.msra.mxu0 0.0
  %159 = vmatprep.subr.mxu0 0.0
  %160 = vmatpush1.msra.mxu0 0.0
  %161 = vmatprep.subr.mxu0 0.0
  %162 = vmatpush1.msra.mxu0 0.0
  %163 = vmatprep.subr.mxu0 0.0
  %164 = vmatpush1.msra.mxu0 0.0
  %165 = vmatprep.subr.mxu0 0.0
  %166 = vmatpush1.msra.mxu0 0.0
  %167 = vmatprep.subr.mxu0 0.0
  %168 = vmatpush1.msra.mxu0 0.0
  %169 = vmatprep.subr.mxu0 0.0
  %170 = vmatpush1.msra.mxu0 0.0
  %171 = vmatprep.subr.mxu0 0.0
  %172 = vmatpush1.msra.mxu0 0.0
  %173 = vmatprep.subr.mxu0 0.0
  %174 = vmatpush1.msra.mxu0 0.0
  %175 = vmatprep.subr.mxu0 0.0
  %176 = vmatpush1.msra.mxu0 0.0
  %177 = vmatprep.subr.mxu0 0.0
  %178 = vmatpush1.msra.mxu0 0.0
  %179 = vmatprep.subr.mxu0 0.0
  %180 = vmatpush1.msra.mxu0 0.0
  %181 = vmatprep.mubr.f32.mxu0 0.0
  %182 = vmatmul.mubr.f32.gmra.mrb[0].mxu0 %v115
  %v183 = vpop.f32.mrb[0].mxu0
  %v184 = vadd.f32 %v111, %v183
  %v185 = vpop.f32.mrb[0].mxu0
  %186 = vdwg.mxu0
  %v187 = vlaneseq
  %v188 = vand.u32 %v187, 127
  %v189 = vtanh.pop %v184
  %v190 = vmax.f32 %v184, 0.0
  %vm191 = vcmp.ne.f32.partialorder %v184, %v184
  %v192 = vadd.f32 %v184, 0.0
  %v193 = vand.u32 2147483647, %v184
  %v194 = vsub.f32 0.0, %v193
  %v195 = vmul.f32 %v194, 1.442695
  %v196 = vpow.pop %v195
  %v197 = vadd.f32 %v196, 1.0
  %v198 = vlog2.pop %v197
  %v199 = vmul.f32 %v198, 0.6931472
  %v200 = vmul.f32 -0.5, %v196
  %v201 = vadd.f32 %v200, 1.0
  %v202 = vmul.f32 %v201, %v196
  %v203 = vand.u32 2147483647, %v196
  %vm204 = vcmp.lt.f32.partialorder %v203, 0.0004427343
  %v205 = vsel %vm204, %v202, %v199
  %v206 = vadd.f32 %v190, %v205
  %v207 = vsel %vm191, %v192, %v206
  %v208 = vadd.f32 %v207, 0.001
  %vm209 = vcmp.lt.s32.totalorder %v188, 4
  %vm210 = vcmp.lt.s32.totalorder %v188, 8
  %v211 = vsel %vm210, %v208, %v184
  %v212 = vsel %vm209, %v189, %v211
  %vm213 = vcmask 72704
  %214 = vst.msk [vmem:[%s4] sm:$0xff] %vm213, %v212
  // Predicated region
  $region18: #{actor_critic_forward.1} parent=0 // pred_check
    _
  $region19: #{actor_critic_forward.1} parent=0 // pred_check_branch
    %216 = sbr.rel (0) target = $region21
  $region20: #{actor_critic_forward.1} parent=0 // pred_region
    _
  $region21: #{actor_critic_forward.1} parent=0 // pred_fallthru
    _
  // Predicated region
  $region22: #{actor_critic_forward.1} parent=0 // pred_check
    _
  $region23: #{actor_critic_forward.1} parent=0 // pred_check_branch
    %218 = sbr.rel (0) target = $region25
  $region24: #{actor_critic_forward.1} parent=0 // pred_region
    _
  $region25: #{actor_critic_forward.1} parent=0 // pred_fallthru
    _

</llo_original>
